<compile_context>
chip_gen: v5e
topology: v5e:2x2
jax: 0.10.0
libtpu: 0.0.40
codegen_flags: <defaults>
</compile_context>

<pallas_src>
import functools

import jax
import jax.numpy as jnp
from jax.experimental import pallas as pl
from jax.experimental.pallas import tpu as pltpu

_LANES = 128
_MiB = 1024 * 1024


def _round_up(x, m):
    return (x + m - 1) // m * m


def _cdiv(a, b):
    return -(-a // b)


def _sublane_multiple(dtype):
    # f32 -> 8 rows / vreg, bf16 -> 16, int8/fp8 -> 32
    return {4: 8, 2: 16, 1: 32}.get(jnp.dtype(dtype).itemsize, 8)


def _ln_rowwise_kernel(x_ref, w_ref, b_ref, o_ref, *, eps, inv_dm1, approx):
    """One normalized row per sublane-row; used when no lane-dense packing applies."""
    x = x_ref[...].astype(jnp.float32)                 # (tile, D)
    w = w_ref[...].astype(jnp.float32)                 # (1, D)
    b = b_ref[...].astype(jnp.float32)                 # (1, D)
    mean = jnp.mean(x, axis=-1, keepdims=True)         # (tile, 1)
    diff = x - mean
    var = jnp.sum(diff * diff, axis=-1, keepdims=True) * inv_dm1   # unbiased (D-1)
    inv = pl.reciprocal(jnp.sqrt(var) + eps, approx=approx)
    o_ref[...] = (w * (diff * inv) + b).astype(o_ref.dtype)


def _ln_packed_kernel(seg_ref, x_ref, w_ref, b_ref, o_ref, *, eps, inv_d, inv_dm1, approx):
    """`pack` consecutive rows packed into one 128-lane slab; segmented reduction via a
    block-diagonal ones matrix on the otherwise-idle MXU.  seg is DMA'd once (constant
    index_map) instead of being rebuilt per grid step."""
    x = x_ref[...].astype(jnp.float32)                 # (tile, 128)
    w = w_ref[...].astype(jnp.float32)                 # (1, 128) = weight tiled `pack` times
    b = b_ref[...].astype(jnp.float32)
    seg = seg_ref[...]                                 # (128, 128) block-diagonal ones, f32
    # x @ seg: every lane gets the sum over its own d_model-wide segment (broadcast back).
    s1 = jnp.dot(x, seg, preferred_element_type=jnp.float32)
    mean = s1 * inv_d
    diff = x - mean
    s2 = jnp.dot(diff * diff, seg, preferred_element_type=jnp.float32)
    var = s2 * inv_dm1
    inv = pl.reciprocal(jnp.sqrt(var) + eps, approx=approx)
    o_ref[...] = (w * (diff * inv) + b).astype(o_ref.dtype)


def layer_norm_pallas(x, weight, bias, eps=1e-5, *, row_tile=None, approx_reciprocal=False):
    """x: (..., D); weight, bias: (D,). Returns same shape/dtype as x."""
    orig_shape = x.shape
    d_model = orig_shape[-1]
    x2 = x.reshape(-1, d_model)
    rows = x2.shape[0]
    out_dtype = x.dtype

    # Lane-dense packing for small feature dims (e.g. D=32 -> 4 rows per 128-lane slab).
    # Only taken when the repack is a free row-major reshape (rows divisible by pack).
    if d_model < _LANES and _LANES % d_model == 0 and rows % (_LANES // d_model) == 0:
        pack = _LANES // d_model
    else:
        pack = 1
    lane_width = d_model * pack
    n_block_rows = rows // pack
    x_blk = x2.reshape(n_block_rows, lane_width)       # free reshape (row-major)

    sub = _sublane_multiple(x.dtype)
    in_sz = jnp.dtype(x.dtype).itemsize
    out_sz = jnp.dtype(out_dtype).itemsize

    # ---- Generation-aware VMEM budget --------------------------------------------------
    try:
        vmem_cap = int(pltpu.get_tpu_info().vmem_capacity_bytes)
    except Exception:
        vmem_cap = 64 * _MiB                           # conservative fallback (v7x size)
    # Per tile-row bytes: double-buffered input + output tiles + f32 intermediates
    # (x_f32 and diff are the big live values inside the body).
    per_row_vmem = lane_width * (2 * in_sz + 2 * out_sz + 2 * 4)
    tile_budget = min(vmem_cap // 2, 48 * _MiB)        # ~32 MiB on v7x, up to 48 MiB on v5e/v6e
    max_tile = max(sub, tile_budget // per_row_vmem // sub * sub)

    # ---- Tile selection -----------------------------------------------------------------
    if row_tile is not None:                           # explicit override only
        tile = max(sub, _round_up(int(row_tile), sub))
        tile = min(tile, _round_up(n_block_rows, sub))
    elif n_block_rows <= sub:
        tile = n_block_rows                            # equals full dim -> always legal
    else:
        tile = max_tile
        # Ensure >= 2 grid steps whenever possible so both v7x TensorCores get work.
        tile = min(tile, _round_up(_cdiv(n_block_rows, 2), sub))
        tile = min(tile, _round_up(n_block_rows, sub))
        tile = max(tile, sub)

    grid = (_cdiv(n_block_rows, tile),)                # partial last block handled by Pallas

    # torch.std is unbiased; D == 1 gives nan (matches torch).
    inv_dm1 = (1.0 / (d_model - 1)) if d_model > 1 else float("nan")

    w_blk = jnp.tile(weight.reshape(1, d_model), (1, pack))   # (1, lane_width)
    b_blk = jnp.tile(bias.reshape(1, d_model), (1, pack))

    x_spec = pl.BlockSpec((tile, lane_width), lambda i: (i, 0))
    wb_spec = pl.BlockSpec((1, lane_width), lambda i: (0, 0))          # DMA'd once
    out_spec = pl.BlockSpec((tile, lane_width), lambda i: (i, 0))

    if pack > 1:
        lanes = jnp.arange(lane_width) // d_model
        seg = (lanes[:, None] == lanes[None, :]).astype(jnp.float32)   # (128, 128) block-diag
        kernel = functools.partial(_ln_packed_kernel, eps=float(eps),
                                   inv_d=1.0 / d_model, inv_dm1=inv_dm1,
                                   approx=approx_reciprocal)
        in_specs = [pl.BlockSpec((lane_width, lane_width), lambda i: (0, 0)),  # seg, resident
                    x_spec, wb_spec, wb_spec]
        args = (seg, x_blk, w_blk, b_blk)
    else:
        kernel = functools.partial(_ln_rowwise_kernel, eps=float(eps),
                                   inv_dm1=inv_dm1, approx=approx_reciprocal)
        in_specs = [x_spec, wb_spec, wb_spec]
        args = (x_blk, w_blk, b_blk)

    # VMEM limit: actual tile footprint (+seg/w/b) with headroom, capped per-generation.
    est = tile * per_row_vmem + 4 * lane_width * lane_width + 4 * lane_width
    vmem_limit = int(min(int(0.75 * vmem_cap), max(est + 8 * _MiB, 32 * _MiB)))

    out = pl.pallas_call(
        kernel,
        out_shape=jax.ShapeDtypeStruct((n_block_rows, lane_width), out_dtype),
        grid_spec=pltpu.PrefetchScalarGridSpec(
            num_scalar_prefetch=0,
            grid=grid,
            in_specs=in_specs,
            out_specs=out_spec,
        ),
        compiler_params=pltpu.CompilerParams(
            dimension_semantics=("parallel",),   # rows independent -> megacore-shardable
            vmem_limit_bytes=vmem_limit,
        ),
    )(*args)

    return out.reshape(orig_shape)                     # free reshape (row-major)


def layer_norm_ref(x, weight, bias, eps=1e-5):
    """Pure-JAX reference matching the PyTorch module exactly."""
    xf = x.astype(jnp.float32)
    mean = jnp.mean(xf, axis=-1, keepdims=True)
    var = jnp.sum((xf - mean) ** 2, axis=-1, keepdims=True) / (x.shape[-1] - 1)
    std = jnp.sqrt(var)
    out = (xf - mean) / (std + eps)
    return (weight * out + bias).astype(x.dtype)


if __name__ == "__main__":
    key = jax.random.PRNGKey(0)

    ok = True
    # Case 1: D=32 < 128  -> packed lane-dense path (seg matmul on MXU).
    # Case 2: D=128       -> standard row-wise path, 2 grid steps (megacore).
    # Case 3: D=96, 21 rows -> non-dividing feature dim + partial last block (no host pad).
    for (B, S, D) in [(2, 8, 32), (2, 8, 128), (3, 7, 96)]:
        kx, kw, kb, key = jax.random.split(key, 4)
        x = jax.random.normal(kx, (B, S, D), dtype=jnp.float32)
        # Module __init__: weight = ones(d_model), bias = zeros(d_model); perturb so the
        # affine path is actually exercised.
        weight = jnp.ones((D,), jnp.float32) + 0.1 * jax.random.normal(kw, (D,), jnp.float32)
        bias = jnp.zeros((D,), jnp.float32) + 0.1 * jax.random.normal(kb, (D,), jnp.float32)

        out = layer_norm_pallas(x, weight, bias, eps=1e-5)
        out = jax.block_until_ready(out)
        ref = layer_norm_ref(x, weight, bias, eps=1e-5)

        ok = ok and (out.shape == x.shape) and (out.dtype == x.dtype)
        ok = ok and bool(jnp.allclose(out, ref, atol=1e-4, rtol=1e-4))

    assert ok, "mismatch vs reference"
    print("KERNEL_OK")
</pallas_src>

<mosaic_0001>
module attributes {stable_mosaic.version = 11 : i64} {
  func.func @_ln_packed_kernel(%arg0: i32, %arg1: memref<128x128xf32, #tpu.memory_space<vmem>>, %arg2: memref<4x128xf32, #tpu.memory_space<vmem>>, %arg3: memref<1x128xf32, #tpu.memory_space<vmem>>, %arg4: memref<1x128xf32, #tpu.memory_space<vmem>>, %arg5: memref<4x128xf32, #tpu.memory_space<vmem>>) attributes {dimension_semantics = [#tpu.dimension_semantics<parallel>], iteration_bounds = array<i64: 1>, scalar_prefetch = 0 : i64, scratch_operands = 0 : i64, tpu.core_type = #tpu.core_type<tc>, window_params = [{pipeline_mode = #tpu.pipeline_mode<synchronous>, transform_indices = @transform_0, window_bounds = array<i64: 128, 128>}, {transform_indices = @transform_1, window_bounds = array<i64: 4, 128>}, {pipeline_mode = #tpu.pipeline_mode<synchronous>, transform_indices = @transform_2, window_bounds = array<i64: 1, 128>}, {pipeline_mode = #tpu.pipeline_mode<synchronous>, transform_indices = @transform_3, window_bounds = array<i64: 1, 128>}, {transform_indices = @transform_4, window_bounds = array<i64: 4, 128>}]} {
    %c0 = arith.constant 0 : index
    %c0_0 = arith.constant 0 : index
    %0 = vector.load %arg2[%c0, %c0_0] : memref<4x128xf32, #tpu.memory_space<vmem>>, vector<4x128xf32>
    %c0_1 = arith.constant 0 : index
    %c0_2 = arith.constant 0 : index
    %1 = vector.load %arg3[%c0_1, %c0_2] : memref<1x128xf32, #tpu.memory_space<vmem>>, vector<1x128xf32>
    %c0_3 = arith.constant 0 : index
    %c0_4 = arith.constant 0 : index
    %2 = vector.load %arg4[%c0_3, %c0_4] : memref<1x128xf32, #tpu.memory_space<vmem>>, vector<1x128xf32>
    %c0_5 = arith.constant 0 : index
    %c0_6 = arith.constant 0 : index
    %3 = vector.load %arg1[%c0_5, %c0_6] : memref<128x128xf32, #tpu.memory_space<vmem>>, vector<128x128xf32>
    %cst = arith.constant dense<0.000000e+00> : vector<4x128xf32>
    %4 = tpu.matmul %0, %3, %cst {dimension_numbers = #tpu.dot_dimension_numbers<[1], [0], [0], [1], [0, 0, 1, 1], [], []>} : vector<4x128xf32>, vector<128x128xf32>, vector<4x128xf32> -> vector<4x128xf32>
    %cst_7 = arith.constant 3.125000e-02 : f32
    %5 = vector.broadcast %cst_7 : f32 to vector<4x128xf32>
    %6 = arith.mulf %4, %5 : vector<4x128xf32>
    %7 = arith.subf %0, %6 : vector<4x128xf32>
    %8 = arith.mulf %7, %7 : vector<4x128xf32>
    %cst_8 = arith.constant dense<0.000000e+00> : vector<4x128xf32>
    %9 = tpu.matmul %8, %3, %cst_8 {dimension_numbers = #tpu.dot_dimension_numbers<[1], [0], [0], [1], [0, 0, 1, 1], [], []>} : vector<4x128xf32>, vector<128x128xf32>, vector<4x128xf32> -> vector<4x128xf32>
    %cst_9 = arith.constant 0.0322580636 : f32
    %10 = vector.broadcast %cst_9 : f32 to vector<4x128xf32>
    %11 = arith.mulf %9, %10 : vector<4x128xf32>
    %12 = math.sqrt %11 : vector<4x128xf32>
    %cst_10 = arith.constant 9.99999974E-6 : f32
    %13 = vector.broadcast %cst_10 : f32 to vector<4x128xf32>
    %14 = arith.addf %12, %13 : vector<4x128xf32>
    %15 = tpu.reciprocal %14 : vector<4x128xf32> -> vector<4x128xf32>
    %16 = arith.mulf %7, %15 : vector<4x128xf32>
    %17 = vector.broadcast %1 : vector<1x128xf32> to vector<4x128xf32>
    %18 = arith.mulf %17, %16 : vector<4x128xf32>
    %19 = vector.broadcast %2 : vector<1x128xf32> to vector<4x128xf32>
    %20 = arith.addf %18, %19 : vector<4x128xf32>
    %c0_11 = arith.constant 0 : index
    %c0_12 = arith.constant 0 : index
    %21 = vector.load %arg5[%c0_11, %c0_12] : memref<4x128xf32, #tpu.memory_space<vmem>>, vector<4x128xf32>
    tpu.vector_store %arg5[%c0_11, %c0_12], %20 {strides = array<i32>} : memref<4x128xf32, #tpu.memory_space<vmem>>, vector<4x128xf32>,
    return
  }
  func.func @transform_0(%arg0: i32) -> (i32, i32) {
    %c0_i32 = arith.constant 0 : i32
    %c0_i32_0 = arith.constant 0 : i32
    %c0_i32_1 = arith.constant 0 : i32
    return %c0_i32, %c0_i32_0 : i32, i32
  }
  func.func @transform_1(%arg0: i32) -> (i32, i32) {
    %c0_i32 = arith.constant 0 : i32
    %c0_i32_0 = arith.constant 0 : i32
    return %arg0, %c0_i32 : i32, i32
  }
  func.func @transform_2(%arg0: i32) -> (i32, i32) {
    %c0_i32 = arith.constant 0 : i32
    %c0_i32_0 = arith.constant 0 : i32
    %c0_i32_1 = arith.constant 0 : i32
    return %c0_i32, %c0_i32_0 : i32, i32
  }
  func.func @transform_3(%arg0: i32) -> (i32, i32) {
    %c0_i32 = arith.constant 0 : i32
    %c0_i32_0 = arith.constant 0 : i32
    %c0_i32_1 = arith.constant 0 : i32
    return %c0_i32, %c0_i32_0 : i32, i32
  }
  func.func @transform_4(%arg0: i32) -> (i32, i32) {
    %c0_i32 = arith.constant 0 : i32
    %c0_i32_0 = arith.constant 0 : i32
    return %arg0, %c0_i32 : i32, i32
  }
}

</mosaic_0001>

<llo_original>
// kernel: tpu_custom_call.1
$region0: #{tpu_custom_call.1}
  #allocation0 [shape = 'u32[]', space=smem, size = 0x4, offset = 0x4, fixed_abs, tag = 'smem constant byte address 0x4 - core index']
  #allocation1 [shape = 'u32[72,128]{1,0:T(1,128)}', space=vmem, size = 0x9000, scoped, tag = 'internal scratch']
  %s0 = inlined_call_operand.hbm [shape: f32[128,128], index: 0, kind: input, shape index: {}]
  %s1 = inlined_call_operand.hbm [shape: f32[4,128], index: 1, kind: input, shape index: {}]
  %s2 = inlined_call_operand.vmem [shape: f32[1,128], index: 2, kind: input, shape index: {}]
  %s3 = inlined_call_operand.vmem [shape: f32[1,128], index: 3, kind: input, shape index: {}]
  %s4 = inlined_call_operand.hbm [shape: f32[4,128], index: 4, kind: output, shape index: {}]
  %s5 = sld [smem:[#allocation0]]
  $region34: #{tpu_custom_call.1} parent=0
    _
  %s7 = ssub.s32 1, %s5
  %s8 = scalar_select 0, %s7, %s5
  $region1: #{tpu_custom_call.1} parent=0
    #allocation2 [shape = 'u8[65536]{0}', space=vmem, size = 0x10000, scoped, tag = 'input window, operand 0, single buffered']
    #allocation3 [shape = 's32[1]{0}', space=sflag, size = 0x4, scoped, tag = 'scoped memory for tpu_custom_call.1']
    #allocation4 [shape = 's32[1]{0}', space=sflag, size = 0x4, scoped, tag = 'scoped memory for tpu_custom_call.1']
    #allocation5 [shape = 'u8[2048]{0}', space=vmem, size = 0x800, scoped, tag = 'input window, operand 1, single buffered']
    #allocation6 [shape = 's32[1]{0}', space=sflag, size = 0x4, scoped, tag = 'scoped memory for tpu_custom_call.1']
    #allocation7 [shape = 'u8[2048]{0}', space=vmem, size = 0x800, scoped, tag = 'output window, operand 0, single buffered']
    %9 = vsyncpa [#allocation3], 0
    %10 = vsyncpa [#allocation6], 0
    %11 = vsyncpa [#allocation4], 0
    // Predicated region
    $region2: #{tpu_custom_call.1} parent=1 // pred_check
      _
    $region3: #{tpu_custom_call.1} parent=1 // pred_check_branch
      %13 = sbr.rel (0) target = $region5
    $region4: #{tpu_custom_call.1} parent=1 // pred_region
      %15 = vsyncadd [#allocation3], 0
      %s16 = sshll.u32 %s0, 4
      %s17 = int_to_ptr.hbm [resolvable:$true] %s16
      %s18 = sshll.u32 [#allocation2], 4
      %s19 = int_to_ptr.vmem [resolvable:$true] %s18
      %24 = dma.hbm_to_vmem [thread:$0]  %s17, 2048, %s19, [#allocation3], 128, 128, 8
    $region5: #{tpu_custom_call.1} parent=1 // pred_fallthru
      _
    // Predicated region
    $region6: #{tpu_custom_call.1} parent=1 // pred_check
      _
    $region7: #{tpu_custom_call.1} parent=1 // pred_check_branch
      %26 = sbr.rel (0) target = $region9
    $region8: #{tpu_custom_call.1} parent=1 // pred_region
      %28 = vsyncadd [#allocation6], 0
      %s30 = sshll.u32 %s1, 4
      %s31 = int_to_ptr.hbm [resolvable:$true] %s30
      %s32 = sshll.u32 [#allocation5], 4
      %s33 = int_to_ptr.vmem [resolvable:$true] %s32
      %35 = dma.hbm_to_vmem [thread:$0]  %s31, 64, %s33, [#allocation6]
    $region9: #{tpu_custom_call.1} parent=1 // pred_fallthru
      _
    // Predicated region
    $region10: #{tpu_custom_call.1} parent=1 // pred_check
      _
    $region11: #{tpu_custom_call.1} parent=1 // pred_check_branch
      %37 = sbr.rel (0) target = $region13
    $region12: #{tpu_custom_call.1} parent=1 // pred_region
      _
    $region13: #{tpu_custom_call.1} parent=1 // pred_fallthru
      _
    // Predicated region
    $region14: #{tpu_custom_call.1} parent=1 // pred_check
      _
    $region15: #{tpu_custom_call.1} parent=1 // pred_check_branch
      %39 = sbr.rel (0) target = $region17
    $region16: #{tpu_custom_call.1} parent=1 // pred_region
      _
    $region17: #{tpu_custom_call.1} parent=1 // pred_fallthru
      _
    // Predicated region
    $region18: #{tpu_custom_call.1} parent=1 // pred_check
      _
    $region19: #{tpu_custom_call.1} parent=1 // pred_check_branch
      %41 = sbr.rel (0) target = $region21
    $region20: #{tpu_custom_call.1} parent=1 // pred_region
      %43 = dma.done [#allocation3], 2048
    $region21: #{tpu_custom_call.1} parent=1 // pred_fallthru
      _
    // Predicated region
    $region22: #{tpu_custom_call.1} parent=1 // pred_check
      _
    $region23: #{tpu_custom_call.1} parent=1 // pred_check_branch
      %45 = sbr.rel (0) target = $region25
    $region24: #{tpu_custom_call.1} parent=1 // pred_region
      %47 = dma.done [#allocation6], 64
    $region25: #{tpu_custom_call.1} parent=1 // pred_fallthru
      _
    %v48 = vld [vmem:[#allocation5] sm:$0xf]
    %v49 = vld [vmem:[%s2] sm:$0x1]
    %v50 = vld [vmem:[%s3] sm:$0x1]
    %v51 = vld [vmem:[#allocation2] sm:$0xff]
    %v52 = vld [vmem:[#allocation2 + $0x8] sm:$0xff]
    %v53 = vld [vmem:[#allocation2 + $0x10] sm:$0xff]
    %v54 = vld [vmem:[#allocation2 + $0x18] sm:$0xff]
    %v55 = vld [vmem:[#allocation2 + $0x20] sm:$0xff]
    %v56 = vld [vmem:[#allocation2 + $0x28] sm:$0xff]
    %v57 = vld [vmem:[#allocation2 + $0x30] sm:$0xff]
    %v58 = vld [vmem:[#allocation2 + $0x38] sm:$0xff]
    %v59 = vld [vmem:[#allocation2 + $0x40] sm:$0xff]
    %v60 = vld [vmem:[#allocation2 + $0x48] sm:$0xff]
    %v61 = vld [vmem:[#allocation2 + $0x50] sm:$0xff]
    %v62 = vld [vmem:[#allocation2 + $0x58] sm:$0xff]
    %v63 = vld [vmem:[#allocation2 + $0x60] sm:$0xff]
    %v64 = vld [vmem:[#allocation2 + $0x68] sm:$0xff]
    %v65 = vld [vmem:[#allocation2 + $0x70] sm:$0xff]
    %v66 = vld [vmem:[#allocation2 + $0x78] sm:$0xff]
    %67 = vmatpush.msra.mxu0 %v66
    %68 = vmatpush.msra.mxu0 %v65
    %69 = vmatpush.msra.mxu0 %v64
    %70 = vmatpush.msra.mxu0 %v63
    %71 = vmatpush.msra.mxu0 %v62
    %72 = vmatpush.msra.mxu0 %v61
    %73 = vmatpush.msra.mxu0 %v60
    %74 = vmatpush.msra.mxu0 %v59
    %75 = vmatpush.msra.mxu0 %v58
    %76 = vmatpush.msra.mxu0 %v57
    %77 = vmatpush.msra.mxu0 %v56
    %78 = vmatpush.msra.mxu0 %v55
    %79 = vmatpush.msra.mxu0 %v54
    %80 = vmatpush.msra.mxu0 %v53
    %81 = vmatpush.msra.mxu0 %v52
    %82 = vmatpush.msra.mxu0 %v51
    %83 = vmatmul.f32.gmra.mxu0 %v48
    %v84 = vpop.f32.mrf.mxu0
    %v85 = vadd.f32 0.0, %v84
    %86 = vdwg.mxu0
    %v87 = vmul.f32 %v85, 0.03125
    %v88 = vsub.f32 %v48, %v87
    %v89 = vmul.f32 %v88, %v88
    %90 = vmatpush.msra.mxu0 %v66
    %91 = vmatpush.msra.mxu0 %v65
    %92 = vmatpush.msra.mxu0 %v64
    %93 = vmatpush.msra.mxu0 %v63
    %94 = vmatpush.msra.mxu0 %v62
    %95 = vmatpush.msra.mxu0 %v61
    %96 = vmatpush.msra.mxu0 %v60
    %97 = vmatpush.msra.mxu0 %v59
    %98 = vmatpush.msra.mxu0 %v58
    %99 = vmatpush.msra.mxu0 %v57
    %100 = vmatpush.msra.mxu0 %v56
    %101 = vmatpush.msra.mxu0 %v55
    %102 = vmatpush.msra.mxu0 %v54
    %103 = vmatpush.msra.mxu0 %v53
    %104 = vmatpush.msra.mxu0 %v52
    %105 = vmatpush.msra.mxu0 %v51
    %106 = vmatmul.f32.gmra.mxu0 %v89
    %v107 = vpop.f32.mrf.mxu0
    %v108 = vadd.f32 0.0, %v107
    %109 = vdwg.mxu0
    %v110 = vmul.f32 %v108, 0.032258064
    %v111 = vrsqrt.pop %v110
    %v112 = vmul.f32 %v111, %v110
    %v113 = vmul.f32 %v112, %v111
    %v114 = vmul.f32 0.5, %v113
    %v115 = vsub.f32 1.5, %v114
    %v116 = vmul.f32 %v111, %v115
    %v117 = vmul.f32 %v110, %v116
    %vm118 = vcmp.eq.f32.partialorder %v110, inf
    %v119 = vsel %vm118, %v110, %v117
    %vm120 = vcmp.eq.f32.partialorder %v110, 0.0
    %v121 = vand.u32 %v110, 2147483648
    %v122 = vsel %vm120, %v121, %v119
    %v123 = vadd.f32 %v122, 1e-05
    %v124 = vrcp.pop %v123
    %v125 = vmul.f32 %v123, %v124
    %v126 = vsub.f32 1.0, %v125
    %v127 = vmul.f32 %v124, %v126
    %v128 = vadd.f32 %v124, %v127
    %vm129 = vweird.f32 %v123
    %vm130 = vweird.f32 %v124
    %vm131 = vmor %vm129, %vm130
    %v132 = vsel %vm131, %v124, %v128
    %v133 = vand.u32 2147483647, %v123
    %vm134 = vcmp.eq.f32.partialorder %v133, 8.507059e+37
    %v135 = vand.u32 %v123, 2147483648
    %v136 = vor.u32 1.1754944e-38, %v135
    %v137 = vsel %vm134, %v136, %v132
    %v138 = vmul.f32 %v88, %v137
    %v140 = vperm.slane %v49, 0
    %v142 = vmul.f32 %v140, %v138
    %v144 = vperm.slane %v50, 0
    %v146 = vadd.f32 %v142, %v144
    %147 = vst [vmem:[#allocation7] sm:$0xf] %v146
    // Predicated region
    $region26: #{tpu_custom_call.1} parent=1 // pred_check
      _
    $region27: #{tpu_custom_call.1} parent=1 // pred_check_branch
      %149 = sbr.rel (0) target = $region29
    $region28: #{tpu_custom_call.1} parent=1 // pred_region
      %151 = vsyncadd [#allocation4], 0
      %s153 = sshll.u32 [#allocation7], 4
      %s154 = int_to_ptr.vmem [resolvable:$true] %s153
      %s155 = sshll.u32 %s4, 4
      %s156 = int_to_ptr.hbm [resolvable:$true] %s155
      %158 = dma.vmem_to_hbm [thread:$0]  %s154, 64, %s156, [#allocation4]
    $region29: #{tpu_custom_call.1} parent=1 // pred_fallthru
      _
    // Predicated region
    $region30: #{tpu_custom_call.1} parent=1 // pred_check
      _
    $region31: #{tpu_custom_call.1} parent=1 // pred_check_branch
      %160 = sbr.rel (0) target = $region33
    $region32: #{tpu_custom_call.1} parent=1 // pred_region
      %162 = dma.done [#allocation4], 64
    $region33: #{tpu_custom_call.1} parent=1 // pred_fallthru
      _
    %163 = vsyncpa [#allocation3], 1
    %164 = vsyncpa [#allocation6], 1
    %165 = vsyncpa [#allocation4], 1

</llo_original>
